<compile_context>
chip_gen: v7x
topology: tpu7x:2x2x1
jax: 0.10.0
libtpu: 0.0.40
codegen_flags: <defaults>
</compile_context>

<pallas_src>
import functools
import math

import jax
import jax.numpy as jnp
from jax import lax
from jax.experimental import pallas as pl
from jax.experimental.pallas import tpu as pltpu

# ---- static crop configuration (the "loss_slice" of the module) -------------
CROP_START = 4
CROP_STOP = 12  # loss_slice = slice(4, 12) -> 8x8 crop

_TILE_CAP_BYTES = 8 * 1024 * 1024        # per-input-tile cap; larger gives no gain
_DEFAULT_MIN_PALLAS_BYTES = 512 * 1024   # below this, a fused XLA reduce wins


def _round_up(x, m):
    return (x + m - 1) // m * m


def _vmem_capacity_bytes():
    """Physical VMEM of the current TPU generation (64 MiB conservative fallback)."""
    try:
        cap = int(pltpu.get_tpu_info().vmem_capacity_bytes)
        if cap > 0:
            return cap
    except Exception:
        pass
    return 64 * 1024 * 1024


def _is_multi_tensorcore():
    """True only on 2-TensorCore-per-chip parts (v7x); v5e/v6e are single-TC."""
    try:
        return "v7" in jax.devices()[0].device_kind.lower()
    except Exception:
        return False


def _cropped_mse_kernel(o_ref, t_ref, out_ref, acc_ref, *,
                        w, crop_start, crop_stop, acc_rows, n_chunks):
    """One grid step: accumulate squared diffs for TB (row-cropped, lane-folded) rows.

    o_ref, t_ref : (TB, Lf) VMEM tiles, native dtype, rows already cropped.
    out_ref      : (1, 8, 128) lane-dense partial-sum tile for this batch split.
    acc_ref      : (acc_rows, Lf) f32 VMEM scratch accumulator (small, per-core).
    """
    j = pl.program_id(1)  # reduction axis within this batch split

    @pl.when(j == 0)
    def _init():
        acc_ref[...] = jnp.zeros_like(acc_ref)

    if n_chunks == 1:
        d = o_ref[...].astype(jnp.float32) - t_ref[...].astype(jnp.float32)
        acc_ref[...] += d * d  # pure VPU work
    else:
        def chunk(c, carry):
            r = pl.multiple_of(c * acc_rows, acc_rows)   # aligned sublane offset
            d = (o_ref[pl.ds(r, acc_rows), :].astype(jnp.float32)
                 - t_ref[pl.ds(r, acc_rows), :].astype(jnp.float32))
            acc_ref[...] += d * d
            return carry
        lax.fori_loop(0, n_chunks, chunk, 0)

    @pl.when(j == pl.num_programs(1) - 1)
    def _finalize():
        # Column crop via a static lane mask (row crop already done by layout;
        # valid after lane folding because Lf is still a multiple of W).
        col = lax.broadcasted_iota(jnp.int32, acc_ref.shape, 1) % w
        keep = (col >= crop_start) & (col < crop_stop)
        total = jnp.sum(jnp.where(keep, acc_ref[...], 0.0))
        out_ref[...] = jnp.broadcast_to(total, out_ref.shape)


def cropped_loss_pallas(output, target, crop_start=CROP_START, crop_stop=CROP_STOP,
                        *, min_pallas_bytes=_DEFAULT_MIN_PALLAS_BYTES):
    assert output.shape == target.shape, (output.shape, target.shape)
    B, H, W = output.shape
    crop = crop_stop - crop_start
    assert 0 <= crop_start < crop_stop <= H and crop_stop <= W, (
        "crop window must fit inside the spatial dims", (H, W, crop_start, crop_stop))

    denom = float(B * crop * crop)     # torch.mean over the cropped window
    itembytes = jnp.dtype(output.dtype).itemsize

    # --- tiny-input fallback: kernel launch + pipeline overhead dominates.
    if 2 * B * crop * W * itembytes < min_pallas_bytes:
        d = (output[:, crop_start:crop_stop, crop_start:crop_stop].astype(jnp.float32)
             - target[:, crop_start:crop_stop, crop_start:crop_stop].astype(jnp.float32))
        return jnp.sum(d * d) * (1.0 / denom)

    # --- row-crop + lane-dense reshape: only the `crop` rows are streamed.
    L = crop * W
    o2 = output[:, crop_start:crop_stop, :].reshape(B, L)
    t2 = target[:, crop_start:crop_stop, :].reshape(B, L)

    # --- lane folding: make the last dim a multiple of 128 (no lane padding).
    fold = 128 // math.gcd(L, 128)
    if fold > 1:
        Bp = _round_up(B, fold)
        if Bp != B:
            pad = ((0, Bp - B), (0, 0))
            o2 = jnp.pad(o2, pad)      # zero rows -> diff 0 -> no contribution
            t2 = jnp.pad(t2, pad)
        o2 = o2.reshape(Bp // fold, fold * L)
        t2 = t2.reshape(Bp // fold, fold * L)
    Bf, Lf = o2.shape

    # --- generation-aware tile sizing (v7x: 64 MiB VMEM, v5e/v6e: 128 MiB).
    vmem_cap = _vmem_capacity_bytes()
    budget = max(24 << 20, int(vmem_cap * 0.70))
    row_bytes = Lf * itembytes
    acc_reserve = 512 * Lf * 4 + (2 << 20)          # f32 accumulator + headroom
    input_budget = max(budget - acc_reserve, 4 * 8 * row_bytes)
    tb = input_budget // (4 * row_bytes)            # 2 inputs x 2 pipeline buffers
    tb = min(tb, _TILE_CAP_BYTES // row_bytes)
    tb = min(tb, _round_up(Bf, 8))
    tb = max(8, (tb // 8) * 8)
    if tb >= 512:
        tb = (tb // 256) * 256                      # so the 256-row chunk divides TB
    quantum = 256 if tb >= 512 else 8

    blocks = pl.cdiv(Bf, tb)
    # Only split the batch on multi-TC parts; on v5e/v6e a split is a serial
    # loop plus extra zero-block HBM traffic.
    ns = 2 if (_is_multi_tensorcore() and blocks >= 2) else 1
    # TODO(synk): on v7x, pltpu.CORE_PARALLEL / pl.core_map would guarantee the
    # split lands on both TensorCores; plain "parallel" is the portable choice.
    blocks = _round_up(blocks, ns)
    # Rebalance TB down to the smallest quantum multiple that still covers Bf in
    # `blocks` tiles -> minimizes zero-padded HBM traffic.
    tb = min(tb, _round_up(pl.cdiv(Bf, blocks), quantum))
    acc_rows = 256 if tb >= 512 else tb
    n_chunks = tb // acc_rows
    steps = blocks // ns

    B_pad = blocks * tb
    if B_pad != Bf:
        pad = ((0, B_pad - Bf), (0, 0))
        o2 = jnp.pad(o2, pad)          # zero pads -> diff 0 -> no contribution
        t2 = jnp.pad(t2, pad)

    footprint = (4 * tb * row_bytes            # 2 inputs x 2 pipeline buffers
                 + acc_rows * Lf * 4           # f32 accumulator scratch
                 + ns * 8 * 128 * 4 * 2)       # output blocks
    vmem_limit = int(min(vmem_cap, max(32 << 20, footprint + (8 << 20))))

    kernel = functools.partial(
        _cropped_mse_kernel, w=W, crop_start=crop_start, crop_stop=crop_stop,
        acc_rows=acc_rows, n_chunks=n_chunks)

    partials = pl.pallas_call(
        kernel,
        out_shape=jax.ShapeDtypeStruct((ns, 8, 128), jnp.float32),
        grid_spec=pltpu.PrefetchScalarGridSpec(
            num_scalar_prefetch=0,
            grid=(ns, steps),
            in_specs=[
                pl.BlockSpec((tb, Lf), lambda s, j: (s * steps + j, 0)),
                pl.BlockSpec((tb, Lf), lambda s, j: (s * steps + j, 0)),
            ],
            out_specs=pl.BlockSpec((1, 8, 128), lambda s, j: (s, 0, 0)),
            scratch_shapes=[pltpu.VMEM((acc_rows, Lf), jnp.float32)],
        ),
        compiler_params=pltpu.CompilerParams(
            dimension_semantics=("parallel", "arbitrary"),
            vmem_limit_bytes=vmem_limit,
        ),
    )(o2, t2)

    return jnp.sum(partials[:, 0, 0]) * (1.0 / denom)


if __name__ == "__main__":
    key = jax.random.PRNGKey(0)
    k1, k2, k3, k4, k5, k6 = jax.random.split(key, 6)

    def ref_loss(o, t, cs=CROP_START, ce=CROP_STOP):
        d = (o.astype(jnp.float32) - t.astype(jnp.float32))[:, cs:ce, cs:ce]
        return jnp.mean(d * d)

    # 1) Tiny shape from the module's 3-D [:, slice, slice] inputs -> XLA fallback path.
    B, H, W = 2, 16, 16
    o1 = jax.random.normal(k1, (B, H, W), dtype=jnp.float32)
    t1 = jax.random.normal(k2, (B, H, W), dtype=jnp.float32)
    l1 = jax.block_until_ready(cropped_loss_pallas(o1, t1))
    r1 = ref_loss(o1, t1)
    assert jnp.allclose(l1, r1, rtol=1e-5, atol=1e-6), (l1, r1)

    # 2) Non-128 lane dim (W=24 -> 2x lane folding) + batch padding; force Pallas path.
    B2, H2, W2 = 160, 20, 24
    o2 = jax.random.normal(k3, (B2, H2, W2), dtype=jnp.float32)
    t2 = jax.random.normal(k4, (B2, H2, W2), dtype=jnp.float32)
    l2 = jax.block_until_ready(cropped_loss_pallas(o2, t2, min_pallas_bytes=0))
    r2 = ref_loss(o2, t2)
    assert jnp.allclose(l2, r2, rtol=1e-5, atol=1e-6), (l2, r2)

    # 3) bf16 inputs, batch large enough to take the Pallas path by default and
    #    exercise the chunked (acc_rows=256) accumulator loop.
    B3, H3, W3 = 1536, 16, 16
    o3 = jax.random.normal(k5, (B3, H3, W3), dtype=jnp.bfloat16)
    t3 = jax.random.normal(k6, (B3, H3, W3), dtype=jnp.bfloat16)
    l3 = jax.block_until_ready(cropped_loss_pallas(o3, t3))
    r3 = ref_loss(o3, t3)
    assert jnp.allclose(l3, r3, rtol=1e-4, atol=1e-6), (l3, r3)

    print("KERNEL_OK")
</pallas_src>

<mosaic_0001>
module attributes {stable_mosaic.version = 11 : i64} {
  func.func @_cropped_mse_kernel(%arg0: i32, %arg1: i32, %arg2: memref<80x384xf32, #tpu.memory_space<vmem>>, %arg3: memref<80x384xf32, #tpu.memory_space<vmem>>, %arg4: memref<1x8x128xf32, #tpu.memory_space<vmem>>, %arg5: memref<80x384xf32, #tpu.memory_space<vmem>>) attributes {dimension_semantics = [#tpu.dimension_semantics<parallel>, #tpu.dimension_semantics<arbitrary>], iteration_bounds = array<i64: 1, 1>, scalar_prefetch = 0 : i64, scratch_operands = 1 : i64, tpu.core_type = #tpu.core_type<tc>, window_params = [{transform_indices = @transform_0, window_bounds = array<i64: 80, 384>}, {transform_indices = @transform_1, window_bounds = array<i64: 80, 384>}, {transform_indices = @transform_2, window_bounds = array<i64: 1, 8, 128>}]} {
    %c0_i32 = arith.constant 0 : i32
    %0 = arith.cmpi eq, %arg1, %c0_i32 : i32
    %1 = arith.extui %0 : i1 to i32
    %c0_i32_0 = arith.constant 0 : i32
    %2 = arith.cmpi ne, %1, %c0_i32_0 : i32
    scf.if %2 {
      %cst = arith.constant 0.000000e+00 : f32
      %13 = vector.broadcast %cst : f32 to vector<80x384xf32>
      %c0_10 = arith.constant 0 : index
      %c0_11 = arith.constant 0 : index
      %14 = vector.load %arg5[%c0_10, %c0_11] : memref<80x384xf32, #tpu.memory_space<vmem>>, vector<80x384xf32>
      tpu.vector_store %arg5[%c0_10, %c0_11], %13 {strides = array<i32>} : memref<80x384xf32, #tpu.memory_space<vmem>>, vector<80x384xf32>,
    } else {
    }
    %c0 = arith.constant 0 : index
    %c0_1 = arith.constant 0 : index
    %3 = vector.load %arg2[%c0, %c0_1] : memref<80x384xf32, #tpu.memory_space<vmem>>, vector<80x384xf32>
    %c0_2 = arith.constant 0 : index
    %c0_3 = arith.constant 0 : index
    %4 = vector.load %arg3[%c0_2, %c0_3] : memref<80x384xf32, #tpu.memory_space<vmem>>, vector<80x384xf32>
    %5 = arith.subf %3, %4 : vector<80x384xf32>
    %c0_4 = arith.constant 0 : index
    %c0_5 = arith.constant 0 : index
    %6 = vector.load %arg5[%c0_4, %c0_5] : memref<80x384xf32, #tpu.memory_space<vmem>>, vector<80x384xf32>
    %7 = arith.mulf %5, %5 : vector<80x384xf32>
    %8 = arith.addf %6, %7 : vector<80x384xf32>
    %c0_6 = arith.constant 0 : index
    %c0_7 = arith.constant 0 : index
    %9 = vector.load %arg5[%c0_6, %c0_7] : memref<80x384xf32, #tpu.memory_space<vmem>>, vector<80x384xf32>
    tpu.vector_store %arg5[%c0_6, %c0_7], %8 {strides = array<i32>} : memref<80x384xf32, #tpu.memory_space<vmem>>, vector<80x384xf32>,
    %c0_i32_8 = arith.constant 0 : i32
    %10 = arith.cmpi eq, %arg1, %c0_i32_8 : i32
    %11 = arith.extui %10 : i1 to i32
    %c0_i32_9 = arith.constant 0 : i32
    %12 = arith.cmpi ne, %11, %c0_i32_9 : i32
    scf.if %12 {
      %13 = tpu.iota {dimensions = array<i32: 1>} : vector<80x384xi32>
      %c24_i32 = arith.constant 24 : i32
      %c0_i32_10 = arith.constant 0 : i32
      %14 = arith.cmpi eq, %c24_i32, %c0_i32_10 : i32
      %c1_i32 = arith.constant 1 : i32
      %15 = arith.select %14, %c1_i32, %c24_i32 : i32
      %16 = vector.broadcast %15 : i32 to vector<80x384xi32>
      %17 = arith.remsi %13, %16 : vector<80x384xi32>
      %c0_i32_11 = arith.constant 0 : i32
      %18 = vector.broadcast %c0_i32_11 : i32 to vector<80x384xi32>
      %19 = arith.cmpi ne, %17, %18 : vector<80x384xi32>
      %c0_i32_12 = arith.constant 0 : i32
      %20 = vector.broadcast %c0_i32_12 : i32 to vector<80x384xi32>
      %21 = arith.cmpi slt, %17, %20 : vector<80x384xi32>
      %c0_i32_13 = arith.constant 0 : i32
      %22 = arith.cmpi slt, %15, %c0_i32_13 : i32
      %23 = vector.broadcast %22 : i1 to vector<80x384xi1>
      %24 = vector.broadcast %23 : vector<80x384xi1> to vector<80x384xi1>
      %25 = arith.xori %21, %24 : vector<80x384xi1>
      %26 = arith.andi %25, %19 : vector<80x384xi1>
      %27 = vector.broadcast %15 : i32 to vector<80x384xi32>
      %28 = arith.addi %17, %27 : vector<80x384xi32>
      %29 = arith.select %26, %28, %17 : vector<80x384xi1>, vector<80x384xi32>
      %c4_i32 = arith.constant 4 : i32
      %30 = vector.broadcast %c4_i32 : i32 to vector<80x384xi32>
      %31 = arith.cmpi sge, %29, %30 : vector<80x384xi32>
      %c12_i32 = arith.constant 12 : i32
      %32 = vector.broadcast %c12_i32 : i32 to vector<80x384xi32>
      %33 = arith.cmpi slt, %29, %32 : vector<80x384xi32>
      %34 = arith.andi %31, %33 : vector<80x384xi1>
      %c0_14 = arith.constant 0 : index
      %c0_15 = arith.constant 0 : index
      %35 = vector.load %arg5[%c0_14, %c0_15] : memref<80x384xf32, #tpu.memory_space<vmem>>, vector<80x384xf32>
      %cst = arith.constant 0.000000e+00 : f32
      %36 = vector.broadcast %cst : f32 to vector<80x384xf32>
      %37 = arith.select %34, %35, %36 : vector<80x384xi1>, vector<80x384xf32>
      %38 = vector.shape_cast %37 : vector<80x384xf32> to vector<1x80x384xf32>
      %cst_16 = arith.constant dense<0.000000e+00> : vector<1xf32>
      %39 = vector.multi_reduction <add>, %38, %cst_16 [1, 2] : vector<1x80x384xf32> to vector<1xf32>
      %40 = vector.shape_cast %39 : vector<1xf32> to vector<1x1x1xf32>
      %41 = vector.extract %40[0, 0, 0] : f32 from vector<1x1x1xf32>
      %42 = vector.broadcast %41 : f32 to vector<1x8x128xf32>
      %c0_17 = arith.constant 0 : index
      %c0_18 = arith.constant 0 : index
      %c0_19 = arith.constant 0 : index
      %43 = vector.load %arg4[%c0_17, %c0_18, %c0_19] : memref<1x8x128xf32, #tpu.memory_space<vmem>>, vector<1x8x128xf32>
      tpu.vector_store %arg4[%c0_17, %c0_18, %c0_19], %42 {strides = array<i32>} : memref<1x8x128xf32, #tpu.memory_space<vmem>>, vector<1x8x128xf32>,
    } else {
    }
    return
  }
  func.func @transform_0(%arg0: i32, %arg1: i32) -> (i32, i32) {
    %c1_i32 = arith.constant 1 : i32
    %0 = arith.muli %arg0, %c1_i32 : i32
    %1 = arith.addi %0, %arg1 : i32
    %c0_i32 = arith.constant 0 : i32
    %c0_i32_0 = arith.constant 0 : i32
    return %1, %c0_i32 : i32, i32
  }
  func.func @transform_1(%arg0: i32, %arg1: i32) -> (i32, i32) {
    %c1_i32 = arith.constant 1 : i32
    %0 = arith.muli %arg0, %c1_i32 : i32
    %1 = arith.addi %0, %arg1 : i32
    %c0_i32 = arith.constant 0 : i32
    %c0_i32_0 = arith.constant 0 : i32
    return %1, %c0_i32 : i32, i32
  }
  func.func @transform_2(%arg0: i32, %arg1: i32) -> (i32, i32, i32) {
    %c0_i32 = arith.constant 0 : i32
    %c0_i32_0 = arith.constant 0 : i32
    %c0_i32_1 = arith.constant 0 : i32
    return %arg0, %c0_i32, %c0_i32_0 : i32, i32, i32
  }
}

</mosaic_0001>

<llo_original>
// kernel: tpu_custom_call.1
$region0: #{tpu_custom_call.1}
  #allocation0 [shape = 'u32[]', space=smem, size = 0x4, offset = 0x4, fixed_abs, tag = 'smem constant byte address 0x4 - core index']
  #allocation1 [shape = 'u32[144,128]{1,0:T(1,128)}', space=vmem, size = 0x12000, scoped, tag = 'internal scratch']
  #allocation2 [shape = 'f32[80,384]{1,0:T(8,128)}', space=vmem, size = 0x1e000, scoped, tag = 'scratch operand']
  %s0 = inlined_call_operand.hbm [shape: f32[80,384], index: 0, kind: input, shape index: {}]
  %s1 = inlined_call_operand.hbm [shape: f32[80,384], index: 1, kind: input, shape index: {}]
  %s2 = inlined_call_operand.hbm [shape: f32[1,8,128], index: 2, kind: output, shape index: {}]
  %s3 = sld [smem:[#allocation0]]
  $region34: #{tpu_custom_call.1} parent=0
    _
  %s5 = ssub.s32 1, %s3
  %s6 = scalar_select 0, %s5, %s3
  $region1: #{tpu_custom_call.1} parent=0
    #allocation3 [shape = 'u8[122880]{0}', space=vmem, size = 0x1e000, scoped, tag = 'input window, operand 0, single buffered']
    #allocation4 [shape = 's32[1]{0}', space=sflag, size = 0x4, scoped, tag = 'scoped memory for tpu_custom_call.1']
    #allocation5 [shape = 's32[1]{0}', space=sflag, size = 0x4, scoped, tag = 'scoped memory for tpu_custom_call.1']
    #allocation6 [shape = 'u8[122880]{0}', space=vmem, size = 0x1e000, scoped, tag = 'input window, operand 1, single buffered']
    #allocation7 [shape = 's32[1]{0}', space=sflag, size = 0x4, scoped, tag = 'scoped memory for tpu_custom_call.1']
    #allocation8 [shape = 'u8[4096]{0}', space=vmem, size = 0x1000, scoped, tag = 'output window, operand 0, single buffered']
    %7 = vsyncpa [#allocation4], 0
    %8 = vsyncpa [#allocation7], 0
    %9 = vsyncpa [#allocation5], 0
    // Predicated region
    $region2: #{tpu_custom_call.1} parent=1 // pred_check
      _
    $region3: #{tpu_custom_call.1} parent=1 // pred_check_branch
      %11 = sbr.rel (0) target = $region5
    $region4: #{tpu_custom_call.1} parent=1 // pred_region
      %s12 = sadd.s32 0, 0
      %s13 = smul.u32 10, %s12
      %s15 = ssub.s32 3840, 3840
      %16 = vsyncadd [#allocation4], %s15
      %s17 = smul.addr %s13, 3
      %s18 = smul.addr %s17, 128
      %s19 = scalar_lea.hbm %s0, %s18
      %s20 = sshll.u32 [#allocation3], 4
      %s21 = int_to_ptr.vmem [resolvable:$true] %s20
      %26 = dma.hbm_to_vmem [thread:$0]  %s19, 3840, %s21, [#allocation4], 384, 384, 24
    $region5: #{tpu_custom_call.1} parent=1 // pred_fallthru
      _
    // Predicated region
    $region6: #{tpu_custom_call.1} parent=1 // pred_check
      _
    $region7: #{tpu_custom_call.1} parent=1 // pred_check_branch
      %28 = sbr.rel (0) target = $region9
    $region8: #{tpu_custom_call.1} parent=1 // pred_region
      %s29 = sadd.s32 0, 0
      %s30 = smul.u32 10, %s29
      %s32 = ssub.s32 3840, 3840
      %33 = vsyncadd [#allocation7], %s32
      %s34 = smul.addr %s30, 3
      %s35 = smul.addr %s34, 128
      %s36 = scalar_lea.hbm %s1, %s35
      %s37 = sshll.u32 [#allocation6], 4
      %s38 = int_to_ptr.vmem [resolvable:$true] %s37
      %43 = dma.hbm_to_vmem [thread:$0]  %s36, 3840, %s38, [#allocation7], 384, 384, 24
    $region9: #{tpu_custom_call.1} parent=1 // pred_fallthru
      _
    // Predicated region
    $region10: #{tpu_custom_call.1} parent=1 // pred_check
      _
    $region11: #{tpu_custom_call.1} parent=1 // pred_check_branch
      %45 = sbr.rel (0) target = $region13
    $region12: #{tpu_custom_call.1} parent=1 // pred_region
      %46 = dma.done [#allocation4], 3840
    $region13: #{tpu_custom_call.1} parent=1 // pred_fallthru
      _
    // Predicated region
    $region14: #{tpu_custom_call.1} parent=1 // pred_check
      _
    $region15: #{tpu_custom_call.1} parent=1 // pred_check_branch
      %48 = sbr.rel (0) target = $region17
    $region16: #{tpu_custom_call.1} parent=1 // pred_region
      %49 = dma.done [#allocation7], 3840
    $region17: #{tpu_custom_call.1} parent=1 // pred_fallthru
      _
    %s50 = sadd.s32 0, 0
    %s51 = smul.u32 10, %s50
    %s52 = sadd.s32 0, 0
    %s53 = smul.u32 10, %s52
    %p54 = scmp.eq.s32.totalorder 0, 0
    // Predicated region
    $region18: #{tpu_custom_call.1} parent=1 // pred_check
      %p55 = pneg %p54
    $region19: #{tpu_custom_call.1} parent=1 // pred_check_branch
      %57 = sbr.rel (%p55) target = $region21
    $region20: #{tpu_custom_call.1} parent=1 // pred_region
      %58 = vst [vmem:[#allocation2] sm:$0xff] 0.0
      %59 = vst [vmem:[#allocation2 + $0x8] sm:$0xff] 0.0
      %60 = vst [vmem:[#allocation2 + $0x10] sm:$0xff] 0.0
      %61 = vst [vmem:[#allocation2 + $0x18] sm:$0xff] 0.0
      %62 = vst [vmem:[#allocation2 + $0x20] sm:$0xff] 0.0
      %63 = vst [vmem:[#allocation2 + $0x28] sm:$0xff] 0.0
      %64 = vst [vmem:[#allocation2 + $0x30] sm:$0xff] 0.0
      %65 = vst [vmem:[#allocation2 + $0x38] sm:$0xff] 0.0
      %66 = vst [vmem:[#allocation2 + $0x40] sm:$0xff] 0.0
      %67 = vst [vmem:[#allocation2 + $0x48] sm:$0xff] 0.0
      %68 = vst [vmem:[#allocation2 + $0x50] sm:$0xff] 0.0
      %69 = vst [vmem:[#allocation2 + $0x58] sm:$0xff] 0.0
      %70 = vst [vmem:[#allocation2 + $0x60] sm:$0xff] 0.0
      %71 = vst [vmem:[#allocation2 + $0x68] sm:$0xff] 0.0
      %72 = vst [vmem:[#allocation2 + $0x70] sm:$0xff] 0.0
      %73 = vst [vmem:[#allocation2 + $0x78] sm:$0xff] 0.0
      %74 = vst [vmem:[#allocation2 + $0x80] sm:$0xff] 0.0
      %75 = vst [vmem:[#allocation2 + $0x88] sm:$0xff] 0.0
      %76 = vst [vmem:[#allocation2 + $0x90] sm:$0xff] 0.0
      %77 = vst [vmem:[#allocation2 + $0x98] sm:$0xff] 0.0
      %78 = vst [vmem:[#allocation2 + $0xa0] sm:$0xff] 0.0
      %79 = vst [vmem:[#allocation2 + $0xa8] sm:$0xff] 0.0
      %80 = vst [vmem:[#allocation2 + $0xb0] sm:$0xff] 0.0
      %81 = vst [vmem:[#allocation2 + $0xb8] sm:$0xff] 0.0
      %82 = vst [vmem:[#allocation2 + $0xc0] sm:$0xff] 0.0
      %83 = vst [vmem:[#allocation2 + $0xc8] sm:$0xff] 0.0
      %84 = vst [vmem:[#allocation2 + $0xd0] sm:$0xff] 0.0
      %85 = vst [vmem:[#allocation2 + $0xd8] sm:$0xff] 0.0
      %86 = vst [vmem:[#allocation2 + $0xe0] sm:$0xff] 0.0
      %87 = vst [vmem:[#allocation2 + $0xe8] sm:$0xff] 0.0
    $region21: #{tpu_custom_call.1} parent=1 // pred_fallthru
      _
    %v88 = vld [vmem:[#allocation3] sm:$0xff]
    %v89 = vld [vmem:[#allocation3 + $0x8] sm:$0xff]
    %v90 = vld [vmem:[#allocation3 + $0x10] sm:$0xff]
    %v91 = vld [vmem:[#allocation3 + $0x18] sm:$0xff]
    %v92 = vld [vmem:[#allocation3 + $0x20] sm:$0xff]
    %v93 = vld [vmem:[#allocation3 + $0x28] sm:$0xff]
    %v94 = vld [vmem:[#allocation3 + $0x30] sm:$0xff]
    %v95 = vld [vmem:[#allocation3 + $0x38] sm:$0xff]
    %v96 = vld [vmem:[#allocation3 + $0x40] sm:$0xff]
    %v97 = vld [vmem:[#allocation3 + $0x48] sm:$0xff]
    %v98 = vld [vmem:[#allocation3 + $0x50] sm:$0xff]
    %v99 = vld [vmem:[#allocation3 + $0x58] sm:$0xff]
    %v100 = vld [vmem:[#allocation3 + $0x60] sm:$0xff]
    %v101 = vld [vmem:[#allocation3 + $0x68] sm:$0xff]
    %v102 = vld [vmem:[#allocation3 + $0x70] sm:$0xff]
    %v103 = vld [vmem:[#allocation3 + $0x78] sm:$0xff]
    %v104 = vld [vmem:[#allocation3 + $0x80] sm:$0xff]
    %v105 = vld [vmem:[#allocation3 + $0x88] sm:$0xff]
    %v106 = vld [vmem:[#allocation3 + $0x90] sm:$0xff]
    %v107 = vld [vmem:[#allocation3 + $0x98] sm:$0xff]
    %v108 = vld [vmem:[#allocation3 + $0xa0] sm:$0xff]
    %v109 = vld [vmem:[#allocation3 + $0xa8] sm:$0xff]
    %v110 = vld [vmem:[#allocation3 + $0xb0] sm:$0xff]
    %v111 = vld [vmem:[#allocation3 + $0xb8] sm:$0xff]
    %v112 = vld [vmem:[#allocation3 + $0xc0] sm:$0xff]
    %v113 = vld [vmem:[#allocation3 + $0xc8] sm:$0xff]
    %v114 = vld [vmem:[#allocation3 + $0xd0] sm:$0xff]
    %v115 = vld [vmem:[#allocation3 + $0xd8] sm:$0xff]
    %v116 = vld [vmem:[#allocation3 + $0xe0] sm:$0xff]
    %v117 = vld [vmem:[#allocation3 + $0xe8] sm:$0xff]
    %v118 = vld [vmem:[#allocation6] sm:$0xff]
    %v119 = vld [vmem:[#allocation6 + $0x8] sm:$0xff]
    %v120 = vld [vmem:[#allocation6 + $0x10] sm:$0xff]
    %v121 = vld [vmem:[#allocation6 + $0x18] sm:$0xff]
    %v122 = vld [vmem:[#allocation6 + $0x20] sm:$0xff]
    %v123 = vld [vmem:[#allocation6 + $0x28] sm:$0xff]
    %v124 = vld [vmem:[#allocation6 + $0x30] sm:$0xff]
    %v125 = vld [vmem:[#allocation6 + $0x38] sm:$0xff]
    %v126 = vld [vmem:[#allocation6 + $0x40] sm:$0xff]
    %v127 = vld [vmem:[#allocation6 + $0x48] sm:$0xff]
    %v128 = vld [vmem:[#allocation6 + $0x50] sm:$0xff]
    %v129 = vld [vmem:[#allocation6 + $0x58] sm:$0xff]
    %v130 = vld [vmem:[#allocation6 + $0x60] sm:$0xff]
    %v131 = vld [vmem:[#allocation6 + $0x68] sm:$0xff]
    %v132 = vld [vmem:[#allocation6 + $0x70] sm:$0xff]
    %v133 = vld [vmem:[#allocation6 + $0x78] sm:$0xff]
    %v134 = vld [vmem:[#allocation6 + $0x80] sm:$0xff]
    %v135 = vld [vmem:[#allocation6 + $0x88] sm:$0xff]
    %v136 = vld [vmem:[#allocation6 + $0x90] sm:$0xff]
    %v137 = vld [vmem:[#allocation6 + $0x98] sm:$0xff]
    %v138 = vld [vmem:[#allocation6 + $0xa0] sm:$0xff]
    %v139 = vld [vmem:[#allocation6 + $0xa8] sm:$0xff]
    %v140 = vld [vmem:[#allocation6 + $0xb0] sm:$0xff]
    %v141 = vld [vmem:[#allocation6 + $0xb8] sm:$0xff]
    %v142 = vld [vmem:[#allocation6 + $0xc0] sm:$0xff]
    %v143 = vld [vmem:[#allocation6 + $0xc8] sm:$0xff]
    %v144 = vld [vmem:[#allocation6 + $0xd0] sm:$0xff]
    %v145 = vld [vmem:[#allocation6 + $0xd8] sm:$0xff]
    %v146 = vld [vmem:[#allocation6 + $0xe0] sm:$0xff]
    %v147 = vld [vmem:[#allocation6 + $0xe8] sm:$0xff]
    %v148 = vsub.f32 %v88, %v118
    %v149 = vsub.f32 %v89, %v119
    %v150 = vsub.f32 %v90, %v120
    %v151 = vsub.f32 %v91, %v121
    %v152 = vsub.f32 %v92, %v122
    %v153 = vsub.f32 %v93, %v123
    %v154 = vsub.f32 %v94, %v124
    %v155 = vsub.f32 %v95, %v125
    %v156 = vsub.f32 %v96, %v126
    %v157 = vsub.f32 %v97, %v127
    %v158 = vsub.f32 %v98, %v128
    %v159 = vsub.f32 %v99, %v129
    %v160 = vsub.f32 %v100, %v130
    %v161 = vsub.f32 %v101, %v131
    %v162 = vsub.f32 %v102, %v132
    %v163 = vsub.f32 %v103, %v133
    %v164 = vsub.f32 %v104, %v134
    %v165 = vsub.f32 %v105, %v135
    %v166 = vsub.f32 %v106, %v136
    %v167 = vsub.f32 %v107, %v137
    %v168 = vsub.f32 %v108, %v138
    %v169 = vsub.f32 %v109, %v139
    %v170 = vsub.f32 %v110, %v140
    %v171 = vsub.f32 %v111, %v141
    %v172 = vsub.f32 %v112, %v142
    %v173 = vsub.f32 %v113, %v143
    %v174 = vsub.f32 %v114, %v144
    %v175 = vsub.f32 %v115, %v145
    %v176 = vsub.f32 %v116, %v146
    %v177 = vsub.f32 %v117, %v147
    %v178 = vld [vmem:[#allocation2] sm:$0xff]
    %v179 = vld [vmem:[#allocation2 + $0x8] sm:$0xff]
    %v180 = vld [vmem:[#allocation2 + $0x10] sm:$0xff]
    %v181 = vld [vmem:[#allocation2 + $0x18] sm:$0xff]
    %v182 = vld [vmem:[#allocation2 + $0x20] sm:$0xff]
    %v183 = vld [vmem:[#allocation2 + $0x28] sm:$0xff]
    %v184 = vld [vmem:[#allocation2 + $0x30] sm:$0xff]
    %v185 = vld [vmem:[#allocation2 + $0x38] sm:$0xff]
    %v186 = vld [vmem:[#allocation2 + $0x40] sm:$0xff]
    %v187 = vld [vmem:[#allocation2 + $0x48] sm:$0xff]
    %v188 = vld [vmem:[#allocation2 + $0x50] sm:$0xff]
    %v189 = vld [vmem:[#allocation2 + $0x58] sm:$0xff]
    %v190 = vld [vmem:[#allocation2 + $0x60] sm:$0xff]
    %v191 = vld [vmem:[#allocation2 + $0x68] sm:$0xff]
    %v192 = vld [vmem:[#allocation2 + $0x70] sm:$0xff]
    %v193 = vld [vmem:[#allocation2 + $0x78] sm:$0xff]
    %v194 = vld [vmem:[#allocation2 + $0x80] sm:$0xff]
    %v195 = vld [vmem:[#allocation2 + $0x88] sm:$0xff]
    %v196 = vld [vmem:[#allocation2 + $0x90] sm:$0xff]
    %v197 = vld [vmem:[#allocation2 + $0x98] sm:$0xff]
    %v198 = vld [vmem:[#allocation2 + $0xa0] sm:$0xff]
    %v199 = vld [vmem:[#allocation2 + $0xa8] sm:$0xff]
    %v200 = vld [vmem:[#allocation2 + $0xb0] sm:$0xff]
    %v201 = vld [vmem:[#allocation2 + $0xb8] sm:$0xff]
    %v202 = vld [vmem:[#allocation2 + $0xc0] sm:$0xff]
    %v203 = vld [vmem:[#allocation2 + $0xc8] sm:$0xff]
    %v204 = vld [vmem:[#allocation2 + $0xd0] sm:$0xff]
    %v205 = vld [vmem:[#allocation2 + $0xd8] sm:$0xff]
    %v206 = vld [vmem:[#allocation2 + $0xe0] sm:$0xff]
    %v207 = vld [vmem:[#allocation2 + $0xe8] sm:$0xff]
    %v208 = vmul.f32 %v148, %v148
    %v209 = vmul.f32 %v149, %v149
    %v210 = vmul.f32 %v150, %v150
    %v211 = vmul.f32 %v151, %v151
    %v212 = vmul.f32 %v152, %v152
    %v213 = vmul.f32 %v153, %v153
    %v214 = vmul.f32 %v154, %v154
    %v215 = vmul.f32 %v155, %v155
    %v216 = vmul.f32 %v156, %v156
    %v217 = vmul.f32 %v157, %v157
    %v218 = vmul.f32 %v158, %v158
    %v219 = vmul.f32 %v159, %v159
    %v220 = vmul.f32 %v160, %v160
    %v221 = vmul.f32 %v161, %v161
    %v222 = vmul.f32 %v162, %v162
    %v223 = vmul.f32 %v163, %v163
    %v224 = vmul.f32 %v164, %v164
    %v225 = vmul.f32 %v165, %v165
    %v226 = vmul.f32 %v166, %v166
    %v227 = vmul.f32 %v167, %v167
    %v228 = vmul.f32 %v168, %v168
    %v229 = vmul.f32 %v169, %v169
    %v230 = vmul.f32 %v170, %v170
    %v231 = vmul.f32 %v171, %v171
    %v232 = vmul.f32 %v172, %v172
    %v233 = vmul.f32 %v173, %v173
    %v234 = vmul.f32 %v174, %v174
    %v235 = vmul.f32 %v175, %v175
    %v236 = vmul.f32 %v176, %v176
    %v237 = vmul.f32 %v177, %v177
    %v238 = vadd.f32 %v178, %v208
    %v239 = vadd.f32 %v179, %v209
    %v240 = vadd.f32 %v180, %v210
    %v241 = vadd.f32 %v181, %v211
    %v242 = vadd.f32 %v182, %v212
    %v243 = vadd.f32 %v183, %v213
    %v244 = vadd.f32 %v184, %v214
    %v245 = vadd.f32 %v185, %v215
    %v246 = vadd.f32 %v186, %v216
    %v247 = vadd.f32 %v187, %v217
    %v248 = vadd.f32 %v188, %v218
    %v249 = vadd.f32 %v189, %v219
    %v250 = vadd.f32 %v190, %v220
    %v251 = vadd.f32 %v191, %v221
    %v252 = vadd.f32 %v192, %v222
    %v253 = vadd.f32 %v193, %v223
    %v254 = vadd.f32 %v194, %v224
    %v255 = vadd.f32 %v195, %v225
    %v256 = vadd.f32 %v196, %v226
    %v257 = vadd.f32 %v197, %v227
    %v258 = vadd.f32 %v198, %v228
    %v259 = vadd.f32 %v199, %v229
    %v260 = vadd.f32 %v200, %v230
    %v261 = vadd.f32 %v201, %v231
    %v262 = vadd.f32 %v202, %v232
    %v263 = vadd.f32 %v203, %v233
    %v264 = vadd.f32 %v204, %v234
    %v265 = vadd.f32 %v205, %v235
    %v266 = vadd.f32 %v206, %v236
    %v267 = vadd.f32 %v207, %v237
    %268 = vst [vmem:[#allocation2] sm:$0xff] %v238
    %269 = vst [vmem:[#allocation2 + $0x8] sm:$0xff] %v239
    %270 = vst [vmem:[#allocation2 + $0x10] sm:$0xff] %v240
    %271 = vst [vmem:[#allocation2 + $0x18] sm:$0xff] %v241
    %272 = vst [vmem:[#allocation2 + $0x20] sm:$0xff] %v242
    %273 = vst [vmem:[#allocation2 + $0x28] sm:$0xff] %v243
    %274 = vst [vmem:[#allocation2 + $0x30] sm:$0xff] %v244
    %275 = vst [vmem:[#allocation2 + $0x38] sm:$0xff] %v245
    %276 = vst [vmem:[#allocation2 + $0x40] sm:$0xff] %v246
    %277 = vst [vmem:[#allocation2 + $0x48] sm:$0xff] %v247
    %278 = vst [vmem:[#allocation2 + $0x50] sm:$0xff] %v248
    %279 = vst [vmem:[#allocation2 + $0x58] sm:$0xff] %v249
    %280 = vst [vmem:[#allocation2 + $0x60] sm:$0xff] %v250
    %281 = vst [vmem:[#allocation2 + $0x68] sm:$0xff] %v251
    %282 = vst [vmem:[#allocation2 + $0x70] sm:$0xff] %v252
    %283 = vst [vmem:[#allocation2 + $0x78] sm:$0xff] %v253
    %284 = vst [vmem:[#allocation2 + $0x80] sm:$0xff] %v254
    %285 = vst [vmem:[#allocation2 + $0x88] sm:$0xff] %v255
    %286 = vst [vmem:[#allocation2 + $0x90] sm:$0xff] %v256
    %287 = vst [vmem:[#allocation2 + $0x98] sm:$0xff] %v257
    %288 = vst [vmem:[#allocation2 + $0xa0] sm:$0xff] %v258
    %289 = vst [vmem:[#allocation2 + $0xa8] sm:$0xff] %v259
    %290 = vst [vmem:[#allocation2 + $0xb0] sm:$0xff] %v260
    %291 = vst [vmem:[#allocation2 + $0xb8] sm:$0xff] %v261
    %292 = vst [vmem:[#allocation2 + $0xc0] sm:$0xff] %v262
    %293 = vst [vmem:[#allocation2 + $0xc8] sm:$0xff] %v263
    %294 = vst [vmem:[#allocation2 + $0xd0] sm:$0xff] %v264
    %295 = vst [vmem:[#allocation2 + $0xd8] sm:$0xff] %v265
    %296 = vst [vmem:[#allocation2 + $0xe0] sm:$0xff] %v266
    %297 = vst [vmem:[#allocation2 + $0xe8] sm:$0xff] %v267
    // Predicated region
    $region22: #{tpu_custom_call.1} parent=1 // pred_check
      %p298 = pneg %p54
    $region23: #{tpu_custom_call.1} parent=1 // pred_check_branch
      %300 = sbr.rel (%p298) target = $region25
    $region24: #{tpu_custom_call.1} parent=1 // pred_region
      %v301 = vlaneseq
      %v302 = vand.u32 %v301, 127
      %v303 = vadd.s32 %v302, 128
      %v304 = vadd.s32 %v302, 256
      %vm305 = vcmp.lt.s32.totalorder %v302, 0
      %v306 = vsub.s32 0, %v302
      %v307 = vsel %vm305, %v306, %v302
      %v308 = vmul.u32.u64.compose %v307, 2863311531
      %v309 = vextract.low.u32 %v308
      %v310 = vextract.high.u32 %v308
      %v311 = vshrl.u32 %v310, 4
      %v312 = vmul.u32 %v311, 24
      %v313 = vsub.s32 %v307, %v312
      %v314 = vsub.s32 0, %v313
      %v315 = vsel %vm305, %v314, %v313
      %vm316 = vcmp.lt.s32.totalorder %v303, 0
      %v317 = vsub.s32 0, %v303
      %v318 = vsel %vm316, %v317, %v303
      %v319 = vmul.u32.u64.compose %v318, 2863311531
      %v320 = vextract.low.u32 %v319
      %v321 = vextract.high.u32 %v319
      %v322 = vshrl.u32 %v321, 4
      %v323 = vmul.u32 %v322, 24
      %v324 = vsub.s32 %v318, %v323
      %v325 = vsub.s32 0, %v324
      %v326 = vsel %vm316, %v325, %v324
      %vm327 = vcmp.lt.s32.totalorder %v304, 0
      %v328 = vsub.s32 0, %v304
      %v329 = vsel %vm327, %v328, %v304
      %v330 = vmul.u32.u64.compose %v329, 2863311531
      %v331 = vextract.low.u32 %v330
      %v332 = vextract.high.u32 %v330
      %v333 = vshrl.u32 %v332, 4
      %v334 = vmul.u32 %v333, 24
      %v335 = vsub.s32 %v329, %v334
      %v336 = vsub.s32 0, %v335
      %v337 = vsel %vm327, %v336, %v335
      %vm338 = vcmp.ne.s32.totalorder %v315, 0
      %vm339 = vcmp.ne.s32.totalorder %v326, 0
      %vm340 = vcmp.ne.s32.totalorder %v337, 0
      %vm341 = vcmp.lt.s32.totalorder %v315, 0
      %vm342 = vcmp.lt.s32.totalorder %v326, 0
      %vm343 = vcmp.lt.s32.totalorder %v337, 0
      %vm344 = vmand %vm341, %vm338
      %vm345 = vmand %vm342, %vm339
      %vm346 = vmand %vm343, %vm340
      %v347 = vadd.s32 %v315, 24
      %v348 = vadd.s32 %v326, 24
      %v349 = vadd.s32 %v337, 24
      %v350 = vsel %vm344, %v347, %v315
      %v351 = vsel %vm345, %v348, %v326
      %v352 = vsel %vm346, %v349, %v337
      %vm353 = vcmp.ge.s32.totalorder %v350, 4
      %vm354 = vcmp.ge.s32.totalorder %v351, 4
      %vm355 = vcmp.ge.s32.totalorder %v352, 4
      %vm356 = vcmp.lt.s32.totalorder %v350, 12
      %vm357 = vcmp.lt.s32.totalorder %v351, 12
      %vm358 = vcmp.lt.s32.totalorder %v352, 12
      %vm359 = vmand %vm353, %vm356
      %vm360 = vmand %vm354, %vm357
      %vm361 = vmand %vm355, %vm358
      %v362 = vld [vmem:[#allocation2] sm:$0xff]
      %v363 = vld [vmem:[#allocation2 + $0x8] sm:$0xff]
      %v364 = vld [vmem:[#allocation2 + $0x10] sm:$0xff]
      %v365 = vld [vmem:[#allocation2 + $0x18] sm:$0xff]
      %v366 = vld [vmem:[#allocation2 + $0x20] sm:$0xff]
      %v367 = vld [vmem:[#allocation2 + $0x28] sm:$0xff]
      %v368 = vld [vmem:[#allocation2 + $0x30] sm:$0xff]
      %v369 = vld [vmem:[#allocation2 + $0x38] sm:$0xff]
      %v370 = vld [vmem:[#allocation2 + $0x40] sm:$0xff]
      %v371 = vld [vmem:[#allocation2 + $0x48] sm:$0xff]
      %v372 = vld [vmem:[#allocation2 + $0x50] sm:$0xff]
      %v373 = vld [vmem:[#allocation2 + $0x58] sm:$0xff]
      %v374 = vld [vmem:[#allocation2 + $0x60] sm:$0xff]
      %v375 = vld [vmem:[#allocation2 + $0x68] sm:$0xff]
      %v376 = vld [vmem:[#allocation2 + $0x70] sm:$0xff]
      %v377 = vld [vmem:[#allocation2 + $0x78] sm:$0xff]
      %v378 = vld [vmem:[#allocation2 + $0x80] sm:$0xff]
      %v379 = vld [vmem:[#allocation2 + $0x88] sm:$0xff]
      %v380 = vld [vmem:[#allocation2 + $0x90] sm:$0xff]
      %v381 = vld [vmem:[#allocation2 + $0x98] sm:$0xff]
      %v382 = vld [vmem:[#allocation2 + $0xa0] sm:$0xff]
      %v383 = vld [vmem:[#allocation2 + $0xa8] sm:$0xff]
      %v384 = vld [vmem:[#allocation2 + $0xb0] sm:$0xff]
      %v385 = vld [vmem:[#allocation2 + $0xb8] sm:$0xff]
      %v386 = vld [vmem:[#allocation2 + $0xc0] sm:$0xff]
      %v387 = vld [vmem:[#allocation2 + $0xc8] sm:$0xff]
      %v388 = vld [vmem:[#allocation2 + $0xd0] sm:$0xff]
      %v389 = vld [vmem:[#allocation2 + $0xd8] sm:$0xff]
      %v390 = vld [vmem:[#allocation2 + $0xe0] sm:$0xff]
      %v391 = vld [vmem:[#allocation2 + $0xe8] sm:$0xff]
      %v392 = vsel %vm359, %v362, 0.0
      %v393 = vsel %vm360, %v363, 0.0
      %v394 = vsel %vm361, %v364, 0.0
      %v395 = vsel %vm359, %v365, 0.0
      %v396 = vsel %vm360, %v366, 0.0
      %v397 = vsel %vm361, %v367, 0.0
      %v398 = vsel %vm359, %v368, 0.0
      %v399 = vsel %vm360, %v369, 0.0
      %v400 = vsel %vm361, %v370, 0.0
      %v401 = vsel %vm359, %v371, 0.0
      %v402 = vsel %vm360, %v372, 0.0
      %v403 = vsel %vm361, %v373, 0.0
      %v404 = vsel %vm359, %v374, 0.0
      %v405 = vsel %vm360, %v375, 0.0
      %v406 = vsel %vm361, %v376, 0.0
      %v407 = vsel %vm359, %v377, 0.0
      %v408 = vsel %vm360, %v378, 0.0
      %v409 = vsel %vm361, %v379, 0.0
      %v410 = vsel %vm359, %v380, 0.0
      %v411 = vsel %vm360, %v381, 0.0
      %v412 = vsel %vm361, %v382, 0.0
      %v413 = vsel %vm359, %v383, 0.0
      %v414 = vsel %vm360, %v384, 0.0
      %v415 = vsel %vm361, %v385, 0.0
      %v416 = vsel %vm359, %v386, 0.0
      %v417 = vsel %vm360, %v387, 0.0
      %v418 = vsel %vm361, %v388, 0.0
      %v419 = vsel %vm359, %v389, 0.0
      %v420 = vsel %vm360, %v390, 0.0
      %v421 = vsel %vm361, %v391, 0.0
      %v422 = vadd.f32 %v392, %v393
      %v423 = vadd.f32 %v422, %v394
      %v424 = vadd.f32 %v423, %v395
      %v425 = vadd.f32 %v424, %v396
      %v426 = vadd.f32 %v425, %v397
      %v427 = vadd.f32 %v426, %v398
      %v428 = vadd.f32 %v427, %v399
      %v429 = vadd.f32 %v428, %v400
      %v430 = vadd.f32 %v429, %v401
      %v431 = vadd.f32 %v430, %v402
      %v432 = vadd.f32 %v431, %v403
      %v433 = vadd.f32 %v432, %v404
      %v434 = vadd.f32 %v433, %v405
      %v435 = vadd.f32 %v434, %v406
      %v436 = vadd.f32 %v435, %v407
      %v437 = vadd.f32 %v436, %v408
      %v438 = vadd.f32 %v437, %v409
      %v439 = vadd.f32 %v438, %v410
      %v440 = vadd.f32 %v439, %v411
      %v441 = vadd.f32 %v440, %v412
      %v442 = vadd.f32 %v441, %v413
      %v443 = vadd.f32 %v442, %v414
      %v444 = vadd.f32 %v443, %v415
      %v445 = vadd.f32 %v444, %v416
      %v446 = vadd.f32 %v445, %v417
      %v447 = vadd.f32 %v446, %v418
      %v448 = vadd.f32 %v447, %v419
      %v449 = vadd.f32 %v448, %v420
      %v450 = vadd.f32 %v449, %v421
      %451 = vadd.xlane.f32.xlu0 %v450
      %v452 = vpop.xlane.xlu0 %451
      %v453 = vrot.slane %v452, 4
      %v454 = vadd.f32 %v452, %v453
      %v455 = vrot.slane %v454, 2
      %v456 = vadd.f32 %v454, %v455
      %v457 = vrot.slane %v456, 1
      %v458 = vadd.f32 %v456, %v457
      %s459 = vtos %v458
      %v460 = vstv %s459
      %461 = vst [vmem:[#allocation8] sm:$0xff] %v460
    $region25: #{tpu_custom_call.1} parent=1 // pred_fallthru
      _
    // Predicated region
    $region26: #{tpu_custom_call.1} parent=1 // pred_check
      _
    $region27: #{tpu_custom_call.1} parent=1 // pred_check_branch
      %463 = sbr.rel (0) target = $region29
    $region28: #{tpu_custom_call.1} parent=1 // pred_region
      %s465 = ssub.s32 128, 128
      %466 = vsyncadd [#allocation5], %s465
      %s468 = sshll.u32 [#allocation8], 4
      %s469 = int_to_ptr.vmem [resolvable:$true] %s468
      %471 = dma.vmem_to_hbm [thread:$0]  %s469, 128, %s2, [#allocation5]
    $region29: #{tpu_custom_call.1} parent=1 // pred_fallthru
      _
    // Predicated region
    $region30: #{tpu_custom_call.1} parent=1 // pred_check
      _
    $region31: #{tpu_custom_call.1} parent=1 // pred_check_branch
      %473 = sbr.rel (0) target = $region33
    $region32: #{tpu_custom_call.1} parent=1 // pred_region
      %474 = dma.done [#allocation5], 128
    $region33: #{tpu_custom_call.1} parent=1 // pred_fallthru
      _
    %475 = vsyncpa [#allocation4], 1
    %476 = vsyncpa [#allocation7], 1
    %477 = vsyncpa [#allocation5], 1

</llo_original>
